<compile_context>
chip_gen: v7x
topology: tpu7x:2x2x1
jax: 0.10.0
libtpu: 0.0.40
codegen_flags: <defaults>
</compile_context>

<pallas_src>
import jax
import jax.numpy as jnp
from jax.experimental import pallas as pl
from jax.experimental.pallas import tpu as pltpu


def _round_up(x, m):
    return ((x + m - 1) // m) * m


def modify_query_reform_kernel(q_ref, qmask_ref, ent_ref, seed_ref, w_ref, out_ref):
    f32 = jnp.float32

    # --- 1) seed_info_avg = seed_info / seed_info.sum(-1); NaN -> 0 ----------
    # Safe-denominator form: identical to PyTorch's divide-then-zero-NaN for
    # non-negative seed weights (0/0 -> NaN -> 0). Tiny (tb, C) tensor in f32.
    seed = seed_ref[...].astype(f32)                               # (tb, C)
    s_sum = jnp.sum(seed, axis=-1, keepdims=True)                  # (tb, 1)
    zero_sum = s_sum == 0.0
    avg = jnp.where(zero_sum, 0.0, seed / jnp.where(zero_sum, 1.0, s_sum))

    # --- 2) ent_relative_q = bmm(seed_avg[:,None,:], ent_emb)[:,0,:] ---------
    # Batched matvec: keep on the VPU (broadcast-multiply + reduce, f32
    # accumulation); pushing it through the MXU would be <=1/256 utilization.
    ent = ent_ref[...]                                             # (tb, C, Hp)
    ent_rel = jnp.sum(avg[:, :, None].astype(ent.dtype) * ent,
                      axis=1, dtype=f32)                           # (tb, Hp)

    # --- 3) Bilinear score: (ent_rel @ W) . q_emb[b,t] ------------------------
    # One small MXU matmul, then a lane reduction against the q tile.
    w = w_ref[...]                                                 # (Hp, Hp)
    v = jnp.dot(ent_rel.astype(w.dtype), w,
                preferred_element_type=f32)                        # (tb, Hp)
    q = q_ref[...]                                                 # (tb, L, Hp)
    score = jnp.sum(v[:, None, :].astype(q.dtype) * q,
                    axis=-1, dtype=f32)                            # (tb, L)

    # --- 4) mask fill + softmax numerator (normalization deferred) -----------
    qmask = qmask_ref[...].astype(f32)                             # (tb, L)
    score = jnp.where(qmask == 0.0, -1e9, score)
    m = jnp.max(score, axis=-1, keepdims=True)
    e = jnp.exp(score - m)                                         # (tb, L)
    l = jnp.sum(e, axis=-1, keepdims=True)                         # (tb, 1)

    # --- 5) q_update = (e @ q_emb) * 1/l --------------------------------------
    # Re-read the q tile from the already-resident VMEM block instead of
    # holding the earlier value live across the softmax (avoids spilling a
    # large block out of the 64-vreg file); normalize once per (tb, Hp) with
    # an EUP approx reciprocal (TB*H cheap muls instead of TB*L divides).
    q2 = q_ref[...]
    acc = jnp.sum(e[:, :, None].astype(q2.dtype) * q2, axis=1, dtype=f32)
    out = acc * pl.reciprocal(l, approx=True)                      # (tb, Hp)
    out_ref[...] = out.astype(out_ref.dtype)


def modify_query_reform(q_emb, q_mask, ent_emb, seed_info, bilinear_w, *,
                        tb=None, vmem_limit_bytes=None):
    """Returns q_update of shape (B, H), matching the PyTorch forward."""
    B, L, H = q_emb.shape
    _, C, _ = ent_emb.shape
    dtype = q_emb.dtype
    itemsize = jnp.dtype(dtype).itemsize

    # ---- one-time parameter prep: Bilinear weight (1, H, H) -> (Hp, Hp) -----
    # Pad the feature axis to a multiple of 128 so every block is lane-dense;
    # zero-padded lanes contribute nothing to scores or outputs.
    Hp = _round_up(max(H, 128), 128)
    w = bilinear_w.reshape(H, H).astype(jnp.float32)
    if Hp != H:
        w = jnp.pad(w, ((0, Hp - H), (0, Hp - H)))
        q_emb_p = jnp.pad(q_emb, ((0, 0), (0, 0), (0, Hp - H)))
        ent_emb_p = jnp.pad(ent_emb, ((0, 0), (0, 0), (0, Hp - H)))
    else:
        q_emb_p, ent_emb_p = q_emb, ent_emb

    # ---- VMEM limit: the scoped default (not physical VMEM) gates tile size --
    try:
        vmem_phys = int(pltpu.get_tpu_info().vmem_capacity_bytes)
    except Exception:
        vmem_phys = 64 << 20   # conservative fallback (v7x per-TC VMEM)
    if vmem_limit_bytes is None:
        vmem_limit_bytes = int(vmem_phys * 3 // 4)

    # ---- batch tile: largest multiple of 8 whose double-buffered working set
    #      fits ~half the VMEM limit; prefer >=2 grid steps so the DMA pipeline
    #      and both v7x TensorCores have work. ---------------------------------
    if tb is None:
        per_row = ((L + C) * Hp + L + C + Hp) * itemsize * 2   # x2: double buffer
        w_bytes = Hp * Hp * 4                                  # resident weight
        budget = max(vmem_limit_bytes // 2 - w_bytes, per_row * 8)
        tb = max(8, (budget // per_row) // 8 * 8)
        if B >= 16:                       # guarantee >=2 grid steps when possible
            tb = min(tb, _round_up(pl.cdiv(B, 2), 8))
    tb = max(8, (int(tb) // 8) * 8)
    tb = min(tb, _round_up(B, 8))

    # ---- pad batch so tb divides it (padded rows are zeros -> finite output,
    #      sliced off; rows are independent so valid rows are unaffected). -----
    Bp = _round_up(B, tb)
    if Bp != B:
        pad_b = ((0, Bp - B),)
        q_emb_p = jnp.pad(q_emb_p, pad_b + ((0, 0), (0, 0)))
        ent_emb_p = jnp.pad(ent_emb_p, pad_b + ((0, 0), (0, 0)))
        q_mask_p = jnp.pad(q_mask, pad_b + ((0, 0),))
        seed_p = jnp.pad(seed_info, pad_b + ((0, 0),))
    else:
        q_mask_p, seed_p = q_mask, seed_info

    grid = (Bp // tb,)

    out = pl.pallas_call(
        modify_query_reform_kernel,
        grid=grid,
        out_shape=jax.ShapeDtypeStruct((Bp, Hp), dtype),
        in_specs=[
            pl.BlockSpec((tb, L, Hp), lambda i: (i, 0, 0)),   # q_emb
            pl.BlockSpec((tb, L), lambda i: (i, 0)),          # q_mask
            pl.BlockSpec((tb, C, Hp), lambda i: (i, 0, 0)),   # ent_emb
            pl.BlockSpec((tb, C), lambda i: (i, 0)),          # seed_info
            # Grid-invariant bilinear weight: constant index_map keeps it
            # resident in VMEM across batch tiles.
            pl.BlockSpec((Hp, Hp), lambda i: (0, 0)),
        ],
        out_specs=pl.BlockSpec((tb, Hp), lambda i: (i, 0)),
        compiler_params=pltpu.CompilerParams(
            dimension_semantics=("parallel",),
            vmem_limit_bytes=int(vmem_limit_bytes)),
    )(q_emb_p, q_mask_p, ent_emb_p, seed_p, w)

    return out[:B, :H]


def modify_query_reform_reference(q_emb, q_mask, ent_emb, seed_info, bilinear_w):
    """Pure-JAX mirror of the PyTorch forward (stype='general')."""
    s = jnp.sum(seed_info, axis=-1, keepdims=True)
    avg = seed_info / s
    avg = jnp.where(jnp.isnan(avg), 0.0, avg)
    ent_rel = jnp.einsum("bc,bch->bh", avg, ent_emb)
    W = bilinear_w[0]                                            # (H, H)
    score = jnp.einsum("bh,blh->bl", ent_rel @ W, q_emb)
    score = jnp.where(q_mask == 0.0, -1e9, score)
    attn = jax.nn.softmax(score, axis=-1)
    return jnp.einsum("bl,blh->bh", attn, q_emb)


if __name__ == "__main__":
    B, L, C, H = 2, 8, 8, 32

    key = jax.random.PRNGKey(0)
    ks = jax.random.split(key, 4)

    q_emb = jax.random.normal(ks[0], (B, L, H), jnp.float32)
    ent_emb = jax.random.normal(ks[1], (B, C, H), jnp.float32)
    # Bilinear(h, h, 1, bias=False) weight, shape (1, H, H).
    bilinear_w = jax.random.normal(ks[2], (1, H, H), jnp.float32) * 0.1

    # q_mask: first few tokens are real words, rest padding.
    q_mask = (jnp.arange(L)[None, :] < jnp.array([[6], [4]])).astype(jnp.float32)
    # seed_info: batch 0 has seed entities; batch 1 has none (exercises the
    # NaN -> 0 path of the seed average).
    seed_info = jnp.stack([
        jnp.array([1., 0., 1., 0., 0., 1., 0., 0.], jnp.float32),
        jnp.zeros((C,), jnp.float32),
    ])

    out = modify_query_reform(q_emb, q_mask, ent_emb, seed_info, bilinear_w)
    out = jax.block_until_ready(out)

    ref = modify_query_reform_reference(q_emb, q_mask, ent_emb, seed_info, bilinear_w)
    assert out.shape == (B, H)
    assert bool(jnp.all(jnp.isfinite(out))), "non-finite output"
    assert jnp.allclose(out, ref, atol=1e-2, rtol=1e-2), "mismatch vs reference"

    print("KERNEL_OK")
</pallas_src>

<mosaic_0001>
module attributes {stable_mosaic.version = 11 : i64} {
  func.func @modify_query_reform_kernel(%arg0: i32, %arg1: memref<8x8x128xf32, #tpu.memory_space<vmem>>, %arg2: memref<8x8xf32, #tpu.memory_space<vmem>>, %arg3: memref<8x8x128xf32, #tpu.memory_space<vmem>>, %arg4: memref<8x8xf32, #tpu.memory_space<vmem>>, %arg5: memref<128x128xf32, #tpu.memory_space<vmem>>, %arg6: memref<8x128xf32, #tpu.memory_space<vmem>>) attributes {dimension_semantics = [#tpu.dimension_semantics<parallel>], iteration_bounds = array<i64: 1>, scalar_prefetch = 0 : i64, scratch_operands = 0 : i64, tpu.core_type = #tpu.core_type<tc>, window_params = [{transform_indices = @transform_0, window_bounds = array<i64: 8, 8, 128>}, {transform_indices = @transform_1, window_bounds = array<i64: 8, 8>}, {transform_indices = @transform_2, window_bounds = array<i64: 8, 8, 128>}, {transform_indices = @transform_3, window_bounds = array<i64: 8, 8>}, {pipeline_mode = #tpu.pipeline_mode<synchronous>, transform_indices = @transform_4, window_bounds = array<i64: 128, 128>}, {transform_indices = @transform_5, window_bounds = array<i64: 8, 128>}]} {
    %c0 = arith.constant 0 : index
    %c0_0 = arith.constant 0 : index
    %0 = vector.load %arg4[%c0, %c0_0] : memref<8x8xf32, #tpu.memory_space<vmem>>, vector<8x8xf32>
    %cst = arith.constant dense<0.000000e+00> : vector<8xf32>
    %1 = vector.multi_reduction <add>, %0, %cst [1] : vector<8x8xf32> to vector<8xf32>
    %2 = vector.shape_cast %1 : vector<8xf32> to vector<8x1xf32>
    %cst_1 = arith.constant 0.000000e+00 : f32
    %3 = vector.broadcast %cst_1 : f32 to vector<8x1xf32>
    %4 = arith.cmpf oeq, %2, %3 : vector<8x1xf32>
    %cst_2 = arith.constant 1.000000e+00 : f32
    %5 = vector.broadcast %cst_2 : f32 to vector<8x1xf32>
    %6 = arith.select %4, %5, %2 : vector<8x1xi1>, vector<8x1xf32>
    %7 = vector.broadcast %6 : vector<8x1xf32> to vector<8x8xf32>
    %8 = arith.divf %0, %7 : vector<8x8xf32>
    %cst_3 = arith.constant 0.000000e+00 : f32
    %9 = vector.shape_cast %4 : vector<8x1xi1> to vector<8x1xi1>
    %10 = vector.broadcast %9 : vector<8x1xi1> to vector<8x8xi1>
    %11 = vector.broadcast %cst_3 : f32 to vector<8x8xf32>
    %12 = arith.select %10, %11, %8 : vector<8x8xi1>, vector<8x8xf32>
    %c0_4 = arith.constant 0 : index
    %c0_5 = arith.constant 0 : index
    %c0_6 = arith.constant 0 : index
    %13 = vector.load %arg3[%c0_4, %c0_5, %c0_6] : memref<8x8x128xf32, #tpu.memory_space<vmem>>, vector<8x8x128xf32>
    %14 = vector.shape_cast %12 : vector<8x8xf32> to vector<8x8x1xf32>
    %15 = vector.broadcast %14 : vector<8x8x1xf32> to vector<8x8x128xf32>
    %16 = arith.mulf %15, %13 : vector<8x8x128xf32>
    %cst_7 = arith.constant dense<0.000000e+00> : vector<8x128xf32>
    %17 = vector.multi_reduction <add>, %16, %cst_7 [1] : vector<8x8x128xf32> to vector<8x128xf32>
    %c0_8 = arith.constant 0 : index
    %c0_9 = arith.constant 0 : index
    %18 = vector.load %arg5[%c0_8, %c0_9] : memref<128x128xf32, #tpu.memory_space<vmem>>, vector<128x128xf32>
    %cst_10 = arith.constant dense<0.000000e+00> : vector<8x128xf32>
    %19 = tpu.matmul %17, %18, %cst_10 {dimension_numbers = #tpu.dot_dimension_numbers<[1], [0], [0], [1], [0, 0, 1, 1], [], []>} : vector<8x128xf32>, vector<128x128xf32>, vector<8x128xf32> -> vector<8x128xf32>
    %c0_11 = arith.constant 0 : index
    %c0_12 = arith.constant 0 : index
    %c0_13 = arith.constant 0 : index
    %20 = vector.load %arg1[%c0_11, %c0_12, %c0_13] : memref<8x8x128xf32, #tpu.memory_space<vmem>>, vector<8x8x128xf32>
    %21 = vector.shape_cast %19 : vector<8x128xf32> to vector<8x1x128xf32>
    %22 = vector.broadcast %21 : vector<8x1x128xf32> to vector<8x8x128xf32>
    %23 = arith.mulf %22, %20 : vector<8x8x128xf32>
    %cst_14 = arith.constant dense<0.000000e+00> : vector<8x8xf32>
    %24 = vector.multi_reduction <add>, %23, %cst_14 [2] : vector<8x8x128xf32> to vector<8x8xf32>
    %c0_15 = arith.constant 0 : index
    %c0_16 = arith.constant 0 : index
    %25 = vector.load %arg2[%c0_15, %c0_16] : memref<8x8xf32, #tpu.memory_space<vmem>>, vector<8x8xf32>
    %cst_17 = arith.constant 0.000000e+00 : f32
    %26 = vector.broadcast %cst_17 : f32 to vector<8x8xf32>
    %27 = arith.cmpf oeq, %25, %26 : vector<8x8xf32>
    %cst_18 = arith.constant -1.000000e+09 : f32
    %28 = vector.broadcast %cst_18 : f32 to vector<8x8xf32>
    %29 = arith.select %27, %28, %24 : vector<8x8xi1>, vector<8x8xf32>
    %cst_19 = arith.constant dense<0xFF800000> : vector<8xf32>
    %30 = vector.multi_reduction <maximumf>, %29, %cst_19 [1] : vector<8x8xf32> to vector<8xf32>
    %31 = vector.shape_cast %30 : vector<8xf32> to vector<8x1xf32>
    %32 = vector.broadcast %31 : vector<8x1xf32> to vector<8x8xf32>
    %33 = arith.subf %29, %32 : vector<8x8xf32>
    %34 = math.exp %33 : vector<8x8xf32>
    %cst_20 = arith.constant dense<0.000000e+00> : vector<8xf32>
    %35 = vector.multi_reduction <add>, %34, %cst_20 [1] : vector<8x8xf32> to vector<8xf32>
    %36 = vector.shape_cast %35 : vector<8xf32> to vector<8x1xf32>
    %c0_21 = arith.constant 0 : index
    %c0_22 = arith.constant 0 : index
    %c0_23 = arith.constant 0 : index
    %37 = vector.load %arg1[%c0_21, %c0_22, %c0_23] : memref<8x8x128xf32, #tpu.memory_space<vmem>>, vector<8x8x128xf32>
    %38 = vector.shape_cast %34 : vector<8x8xf32> to vector<8x8x1xf32>
    %39 = vector.broadcast %38 : vector<8x8x1xf32> to vector<8x8x128xf32>
    %40 = arith.mulf %39, %37 : vector<8x8x128xf32>
    %cst_24 = arith.constant dense<0.000000e+00> : vector<8x128xf32>
    %41 = vector.multi_reduction <add>, %40, %cst_24 [1] : vector<8x8x128xf32> to vector<8x128xf32>
    %42 = tpu.reciprocal %36 {approx = true} : vector<8x1xf32> -> vector<8x1xf32>
    %43 = vector.broadcast %42 : vector<8x1xf32> to vector<8x128xf32>
    %44 = arith.mulf %41, %43 : vector<8x128xf32>
    %c0_25 = arith.constant 0 : index
    %c0_26 = arith.constant 0 : index
    %45 = vector.load %arg6[%c0_25, %c0_26] : memref<8x128xf32, #tpu.memory_space<vmem>>, vector<8x128xf32>
    tpu.vector_store %arg6[%c0_25, %c0_26], %44 {strides = array<i32>} : memref<8x128xf32, #tpu.memory_space<vmem>>, vector<8x128xf32>,
    return
  }
  func.func @transform_0(%arg0: i32) -> (i32, i32, i32) {
    %c0_i32 = arith.constant 0 : i32
    %c0_i32_0 = arith.constant 0 : i32
    %c0_i32_1 = arith.constant 0 : i32
    return %arg0, %c0_i32, %c0_i32_0 : i32, i32, i32
  }
  func.func @transform_1(%arg0: i32) -> (i32, i32) {
    %c0_i32 = arith.constant 0 : i32
    %c0_i32_0 = arith.constant 0 : i32
    return %arg0, %c0_i32 : i32, i32
  }
  func.func @transform_2(%arg0: i32) -> (i32, i32, i32) {
    %c0_i32 = arith.constant 0 : i32
    %c0_i32_0 = arith.constant 0 : i32
    %c0_i32_1 = arith.constant 0 : i32
    return %arg0, %c0_i32, %c0_i32_0 : i32, i32, i32
  }
  func.func @transform_3(%arg0: i32) -> (i32, i32) {
    %c0_i32 = arith.constant 0 : i32
    %c0_i32_0 = arith.constant 0 : i32
    return %arg0, %c0_i32 : i32, i32
  }
  func.func @transform_4(%arg0: i32) -> (i32, i32) {
    %c0_i32 = arith.constant 0 : i32
    %c0_i32_0 = arith.constant 0 : i32
    %c0_i32_1 = arith.constant 0 : i32
    return %c0_i32, %c0_i32_0 : i32, i32
  }
  func.func @transform_5(%arg0: i32) -> (i32, i32) {
    %c0_i32 = arith.constant 0 : i32
    %c0_i32_0 = arith.constant 0 : i32
    return %arg0, %c0_i32 : i32, i32
  }
}

</mosaic_0001>

<llo_original>
// kernel: tpu_custom_call.1
$region0: #{tpu_custom_call.1}
  #allocation0 [shape = 'u32[]', space=smem, size = 0x4, offset = 0x4, fixed_abs, tag = 'smem constant byte address 0x4 - core index']
  #allocation1 [shape = 'u32[144,128]{1,0:T(1,128)}', space=vmem, size = 0x12000, scoped, tag = 'internal scratch']
  %s0 = inlined_call_operand.hbm [shape: f32[8,8,128], index: 0, kind: input, shape index: {}]
  %s1 = inlined_call_operand.hbm [shape: f32[8,8], index: 1, kind: input, shape index: {}]
  %s2 = inlined_call_operand.hbm [shape: f32[8,8,128], index: 2, kind: input, shape index: {}]
  %s3 = inlined_call_operand.vmem [shape: f32[8,8], index: 3, kind: input, shape index: {}]
  %s4 = inlined_call_operand.hbm [shape: f32[128,128], index: 4, kind: input, shape index: {}]
  %s5 = inlined_call_operand.hbm [shape: f32[8,128], index: 5, kind: output, shape index: {}]
  %s6 = sld [smem:[#allocation0]]
  $region46: #{tpu_custom_call.1} parent=0
    _
  %s8 = ssub.s32 1, %s6
  %s9 = scalar_select 0, %s8, %s6
  $region1: #{tpu_custom_call.1} parent=0
    #allocation2 [shape = 'u8[32768]{0}', space=vmem, size = 0x8000, scoped, tag = 'input window, operand 0, single buffered']
    #allocation3 [shape = 's32[1]{0}', space=sflag, size = 0x4, scoped, tag = 'scoped memory for tpu_custom_call.1']
    #allocation4 [shape = 's32[1]{0}', space=sflag, size = 0x4, scoped, tag = 'scoped memory for tpu_custom_call.1']
    #allocation5 [shape = 'u8[4096]{0}', space=vmem, size = 0x1000, scoped, tag = 'input window, operand 1, single buffered']
    #allocation6 [shape = 's32[1]{0}', space=sflag, size = 0x4, scoped, tag = 'scoped memory for tpu_custom_call.1']
    #allocation7 [shape = 'u8[32768]{0}', space=vmem, size = 0x8000, scoped, tag = 'input window, operand 2, single buffered']
    #allocation8 [shape = 'u8[65536]{0}', space=vmem, size = 0x10000, scoped, tag = 'input window, operand 4, single buffered']
    #allocation9 [shape = 's32[1]{0}', space=sflag, size = 0x4, scoped, tag = 'scoped memory for tpu_custom_call.1']
    #allocation10 [shape = 'u8[4096]{0}', space=vmem, size = 0x1000, scoped, tag = 'output window, operand 0, single buffered']
    %10 = vsyncpa [#allocation3], 0
    %11 = vsyncpa [#allocation6], 0
    %12 = vsyncpa [#allocation9], 0
    %13 = vsyncpa [#allocation4], 0
    // Predicated region
    $region2: #{tpu_custom_call.1} parent=1 // pred_check
      _
    $region3: #{tpu_custom_call.1} parent=1 // pred_check_branch
      %15 = sbr.rel (0) target = $region5
    $region4: #{tpu_custom_call.1} parent=1 // pred_region
      %s17 = ssub.s32 1024, 1024
      %18 = vsyncadd [#allocation3], %s17
      %s19 = sshll.u32 [#allocation2], 4
      %s20 = int_to_ptr.vmem [resolvable:$true] %s19
      %25 = dma.hbm_to_vmem [thread:$0]  %s0, 1024, %s20, [#allocation3], 128, 128, 8
    $region5: #{tpu_custom_call.1} parent=1 // pred_fallthru
      _
    // Predicated region
    $region6: #{tpu_custom_call.1} parent=1 // pred_check
      _
    $region7: #{tpu_custom_call.1} parent=1 // pred_check_branch
      %27 = sbr.rel (0) target = $region9
    $region8: #{tpu_custom_call.1} parent=1 // pred_region
      %s29 = ssub.s32 128, 128
      %30 = vsyncadd [#allocation6], %s29
      %s32 = sshll.u32 [#allocation5], 4
      %s33 = int_to_ptr.vmem [resolvable:$true] %s32
      %35 = dma.hbm_to_vmem [thread:$0]  %s1, 128, %s33, [#allocation6]
    $region9: #{tpu_custom_call.1} parent=1 // pred_fallthru
      _
    // Predicated region
    $region10: #{tpu_custom_call.1} parent=1 // pred_check
      _
    $region11: #{tpu_custom_call.1} parent=1 // pred_check_branch
      %37 = sbr.rel (0) target = $region13
    $region12: #{tpu_custom_call.1} parent=1 // pred_region
      %s39 = ssub.s32 1024, 1024
      %40 = vsyncadd [#allocation6], %s39
      %s41 = sshll.u32 [#allocation7], 4
      %s42 = int_to_ptr.vmem [resolvable:$true] %s41
      %47 = dma.hbm_to_vmem [thread:$0]  %s2, 1024, %s42, [#allocation6], 128, 128, 8
    $region13: #{tpu_custom_call.1} parent=1 // pred_fallthru
      _
    // Predicated region
    $region14: #{tpu_custom_call.1} parent=1 // pred_check
      _
    $region15: #{tpu_custom_call.1} parent=1 // pred_check_branch
      %49 = sbr.rel (0) target = $region17
    $region16: #{tpu_custom_call.1} parent=1 // pred_region
      _
    $region17: #{tpu_custom_call.1} parent=1 // pred_fallthru
      _
    // Predicated region
    $region18: #{tpu_custom_call.1} parent=1 // pred_check
      _
    $region19: #{tpu_custom_call.1} parent=1 // pred_check_branch
      %51 = sbr.rel (0) target = $region21
    $region20: #{tpu_custom_call.1} parent=1 // pred_region
      %s53 = ssub.s32 2048, 2048
      %54 = vsyncadd [#allocation9], %s53
      %s55 = sshll.u32 [#allocation8], 4
      %s56 = int_to_ptr.vmem [resolvable:$true] %s55
      %61 = dma.hbm_to_vmem [thread:$0]  %s4, 2048, %s56, [#allocation9], 128, 128, 8
    $region21: #{tpu_custom_call.1} parent=1 // pred_fallthru
      _
    // Predicated region
    $region22: #{tpu_custom_call.1} parent=1 // pred_check
      _
    $region23: #{tpu_custom_call.1} parent=1 // pred_check_branch
      %63 = sbr.rel (0) target = $region25
    $region24: #{tpu_custom_call.1} parent=1 // pred_region
      %64 = dma.done [#allocation3], 1024
    $region25: #{tpu_custom_call.1} parent=1 // pred_fallthru
      _
    // Predicated region
    $region26: #{tpu_custom_call.1} parent=1 // pred_check
      _
    $region27: #{tpu_custom_call.1} parent=1 // pred_check_branch
      %66 = sbr.rel (0) target = $region29
    $region28: #{tpu_custom_call.1} parent=1 // pred_region
      %67 = dma.done [#allocation6], 128
    $region29: #{tpu_custom_call.1} parent=1 // pred_fallthru
      _
    // Predicated region
    $region30: #{tpu_custom_call.1} parent=1 // pred_check
      _
    $region31: #{tpu_custom_call.1} parent=1 // pred_check_branch
      %69 = sbr.rel (0) target = $region33
    $region32: #{tpu_custom_call.1} parent=1 // pred_region
      %70 = dma.done [#allocation6], 1024
    $region33: #{tpu_custom_call.1} parent=1 // pred_fallthru
      _
    // Predicated region
    $region34: #{tpu_custom_call.1} parent=1 // pred_check
      _
    $region35: #{tpu_custom_call.1} parent=1 // pred_check_branch
      %72 = sbr.rel (0) target = $region37
    $region36: #{tpu_custom_call.1} parent=1 // pred_region
      %73 = dma.done [#allocation9], 2048
    $region37: #{tpu_custom_call.1} parent=1 // pred_fallthru
      _
    %v74 = vld [vmem:[%s3] sm:$0xff]
    %vm75 = vcmask 64512
    %v76 = vsel %vm75, %v74, 0.0
    %77 = vadd.xlane.f32.xlu0 %v76
    %v78 = vpop.xlane.xlu0 %77
    %vm79 = vcmp.eq.f32.partialorder %v78, 0.0
    %v80 = vsel %vm79, 1.0, %v78
    %v81 = vrcp.pop %v80
    %v82 = vmul.f32 %v74, %v81
    %v83 = vsel %vm79, 1, 0
    %vm84 = vcmp.eq.s32.totalorder %v83, 1
    %v85 = vsel %vm84, 0.0, %v82
    %v86 = vld [vmem:[#allocation7] sm:$0xff]
    %v87 = vld [vmem:[#allocation7 + $0x8] sm:$0xff]
    %v88 = vld [vmem:[#allocation7 + $0x10] sm:$0xff]
    %v89 = vld [vmem:[#allocation7 + $0x18] sm:$0xff]
    %v90 = vld [vmem:[#allocation7 + $0x20] sm:$0xff]
    %v91 = vld [vmem:[#allocation7 + $0x28] sm:$0xff]
    %v92 = vld [vmem:[#allocation7 + $0x30] sm:$0xff]
    %v93 = vld [vmem:[#allocation7 + $0x38] sm:$0xff]
    %v94 = vlaneseq
    %v95 = vshrl.u32 %v94, 7
    %v96 = vsub.s32 0, %v95
    %v97 = vrot.slane %v85, %v96
    %99 = vbcast.lane.b32.xlu0 %v97, 256
    %v100 = vpop.permute.xlu0 %99
    %v101 = vlaneseq
    %v102 = vshrl.u32 %v101, 7
    %v103 = vsub.s32 1, %v102
    %v104 = vrot.slane %v85, %v103
    %106 = vbcast.lane.b32.xlu0 %v104, 256
    %v107 = vpop.permute.xlu0 %106
    %v108 = vlaneseq
    %v109 = vshrl.u32 %v108, 7
    %v110 = vsub.s32 2, %v109
    %v111 = vrot.slane %v85, %v110
    %113 = vbcast.lane.b32.xlu0 %v111, 256
    %v114 = vpop.permute.xlu0 %113
    %v115 = vlaneseq
    %v116 = vshrl.u32 %v115, 7
    %v117 = vsub.s32 3, %v116
    %v118 = vrot.slane %v85, %v117
    %120 = vbcast.lane.b32.xlu0 %v118, 256
    %v121 = vpop.permute.xlu0 %120
    %v122 = vlaneseq
    %v123 = vshrl.u32 %v122, 7
    %v124 = vsub.s32 4, %v123
    %v125 = vrot.slane %v85, %v124
    %127 = vbcast.lane.b32.xlu0 %v125, 256
    %v128 = vpop.permute.xlu0 %127
    %v129 = vlaneseq
    %v130 = vshrl.u32 %v129, 7
    %v131 = vsub.s32 5, %v130
    %v132 = vrot.slane %v85, %v131
    %134 = vbcast.lane.b32.xlu0 %v132, 256
    %v135 = vpop.permute.xlu0 %134
    %v136 = vlaneseq
    %v137 = vshrl.u32 %v136, 7
    %v138 = vsub.s32 6, %v137
    %v139 = vrot.slane %v85, %v138
    %141 = vbcast.lane.b32.xlu0 %v139, 256
    %v142 = vpop.permute.xlu0 %141
    %v143 = vlaneseq
    %v144 = vshrl.u32 %v143, 7
    %v145 = vsub.s32 7, %v144
    %v146 = vrot.slane %v85, %v145
    %148 = vbcast.lane.b32.xlu0 %v146, 256
    %v149 = vpop.permute.xlu0 %148
    %v150 = vmul.f32 %v100, %v86
    %v151 = vmul.f32 %v107, %v87
    %v152 = vmul.f32 %v114, %v88
    %v153 = vmul.f32 %v121, %v89
    %v154 = vmul.f32 %v128, %v90
    %v155 = vmul.f32 %v135, %v91
    %v156 = vmul.f32 %v142, %v92
    %v157 = vmul.f32 %v149, %v93
    %v158 = vrot.slane %v150, 4
    %v159 = vadd.f32 %v150, %v158
    %v160 = vrot.slane %v159, 2
    %v161 = vadd.f32 %v159, %v160
    %v162 = vrot.slane %v161, 1
    %v163 = vadd.f32 %v161, %v162
    %v164 = vrot.slane %v151, 4
    %v165 = vadd.f32 %v151, %v164
    %v166 = vrot.slane %v165, 2
    %v167 = vadd.f32 %v165, %v166
    %v168 = vrot.slane %v167, 1
    %v169 = vadd.f32 %v167, %v168
    %v170 = vrot.slane %v152, 4
    %v171 = vadd.f32 %v152, %v170
    %v172 = vrot.slane %v171, 2
    %v173 = vadd.f32 %v171, %v172
    %v174 = vrot.slane %v173, 1
    %v175 = vadd.f32 %v173, %v174
    %v176 = vrot.slane %v153, 4
    %v177 = vadd.f32 %v153, %v176
    %v178 = vrot.slane %v177, 2
    %v179 = vadd.f32 %v177, %v178
    %v180 = vrot.slane %v179, 1
    %v181 = vadd.f32 %v179, %v180
    %v182 = vrot.slane %v154, 4
    %v183 = vadd.f32 %v154, %v182
    %v184 = vrot.slane %v183, 2
    %v185 = vadd.f32 %v183, %v184
    %v186 = vrot.slane %v185, 1
    %v187 = vadd.f32 %v185, %v186
    %v188 = vrot.slane %v155, 4
    %v189 = vadd.f32 %v155, %v188
    %v190 = vrot.slane %v189, 2
    %v191 = vadd.f32 %v189, %v190
    %v192 = vrot.slane %v191, 1
    %v193 = vadd.f32 %v191, %v192
    %v194 = vrot.slane %v156, 4
    %v195 = vadd.f32 %v156, %v194
    %v196 = vrot.slane %v195, 2
    %v197 = vadd.f32 %v195, %v196
    %v198 = vrot.slane %v197, 1
    %v199 = vadd.f32 %v197, %v198
    %v200 = vrot.slane %v157, 4
    %v201 = vadd.f32 %v157, %v200
    %v202 = vrot.slane %v201, 2
    %v203 = vadd.f32 %v201, %v202
    %v204 = vrot.slane %v203, 1
    %v205 = vadd.f32 %v203, %v204
    %v206 = vld [vmem:[#allocation8] sm:$0xff]
    %v207 = vld [vmem:[#allocation8 + $0x8] sm:$0xff]
    %v208 = vld [vmem:[#allocation8 + $0x10] sm:$0xff]
    %v209 = vld [vmem:[#allocation8 + $0x18] sm:$0xff]
    %v210 = vld [vmem:[#allocation8 + $0x20] sm:$0xff]
    %v211 = vld [vmem:[#allocation8 + $0x28] sm:$0xff]
    %v212 = vld [vmem:[#allocation8 + $0x30] sm:$0xff]
    %v213 = vld [vmem:[#allocation8 + $0x38] sm:$0xff]
    %v214 = vld [vmem:[#allocation8 + $0x40] sm:$0xff]
    %v215 = vld [vmem:[#allocation8 + $0x48] sm:$0xff]
    %v216 = vld [vmem:[#allocation8 + $0x50] sm:$0xff]
    %v217 = vld [vmem:[#allocation8 + $0x58] sm:$0xff]
    %v218 = vld [vmem:[#allocation8 + $0x60] sm:$0xff]
    %v219 = vld [vmem:[#allocation8 + $0x68] sm:$0xff]
    %v220 = vld [vmem:[#allocation8 + $0x70] sm:$0xff]
    %v221 = vld [vmem:[#allocation8 + $0x78] sm:$0xff]
    %vm230 = vcmask 1041409
    %v231 = vsel %vm230, %v169, %v163
    %vm232 = vcmask 1042434
    %v233 = vsel %vm232, %v175, %v231
    %vm234 = vcmask 1043459
    %v235 = vsel %vm234, %v181, %v233
    %vm236 = vcmask 1044484
    %v237 = vsel %vm236, %v187, %v235
    %vm238 = vcmask 1045509
    %v239 = vsel %vm238, %v193, %v237
    %vm240 = vcmask 1046534
    %v241 = vsel %vm240, %v199, %v239
    %vm242 = vcmask 1047559
    %v243 = vsel %vm242, %v205, %v241
    %245 = vmatprep.subr.mxu0 0.0
    %246 = vmatpush1.msra.mxu0 %v206
    %247 = vmatprep.subr.mxu0 0.0
    %248 = vmatpush1.msra.mxu0 %v207
    %249 = vmatprep.subr.mxu0 0.0
    %250 = vmatpush1.msra.mxu0 %v208
    %251 = vmatprep.subr.mxu0 0.0
    %252 = vmatpush1.msra.mxu0 %v209
    %253 = vmatprep.subr.mxu0 0.0
    %254 = vmatpush1.msra.mxu0 %v210
    %255 = vmatprep.subr.mxu0 0.0
    %256 = vmatpush1.msra.mxu0 %v211
    %257 = vmatprep.subr.mxu0 0.0
    %258 = vmatpush1.msra.mxu0 %v212
    %259 = vmatprep.subr.mxu0 0.0
    %260 = vmatpush1.msra.mxu0 %v213
    %261 = vmatprep.subr.mxu0 0.0
    %262 = vmatpush1.msra.mxu0 %v214
    %263 = vmatprep.subr.mxu0 0.0
    %264 = vmatpush1.msra.mxu0 %v215
    %265 = vmatprep.subr.mxu0 0.0
    %266 = vmatpush1.msra.mxu0 %v216
    %267 = vmatprep.subr.mxu0 0.0
    %268 = vmatpush1.msra.mxu0 %v217
    %269 = vmatprep.subr.mxu0 0.0
    %270 = vmatpush1.msra.mxu0 %v218
    %271 = vmatprep.subr.mxu0 0.0
    %272 = vmatpush1.msra.mxu0 %v219
    %273 = vmatprep.subr.mxu0 0.0
    %274 = vmatpush1.msra.mxu0 %v220
    %275 = vmatprep.subr.mxu0 0.0
    %276 = vmatpush1.msra.mxu0 %v221
    %277 = vmatprep.subr.mxu0 0.0
    %278 = vmatpush1.msra.mxu0 0.0
    %279 = vmatprep.subr.mxu0 0.0
    %280 = vmatpush1.msra.mxu0 0.0
    %281 = vmatprep.subr.mxu0 0.0
    %282 = vmatpush1.msra.mxu0 0.0
    %283 = vmatprep.subr.mxu0 0.0
    %284 = vmatpush1.msra.mxu0 0.0
    %285 = vmatprep.subr.mxu0 0.0
    %286 = vmatpush1.msra.mxu0 0.0
    %287 = vmatprep.subr.mxu0 0.0
    %288 = vmatpush1.msra.mxu0 0.0
    %289 = vmatprep.subr.mxu0 0.0
    %290 = vmatpush1.msra.mxu0 0.0
    %291 = vmatprep.subr.mxu0 0.0
    %292 = vmatpush1.msra.mxu0 0.0
    %293 = vmatprep.subr.mxu0 0.0
    %294 = vmatpush1.msra.mxu0 0.0
    %295 = vmatprep.subr.mxu0 0.0
    %296 = vmatpush1.msra.mxu0 0.0
    %297 = vmatprep.subr.mxu0 0.0
    %298 = vmatpush1.msra.mxu0 0.0
    %299 = vmatprep.subr.mxu0 0.0
    %300 = vmatpush1.msra.mxu0 0.0
    %301 = vmatprep.subr.mxu0 0.0
    %302 = vmatpush1.msra.mxu0 0.0
    %303 = vmatprep.subr.mxu0 0.0
    %304 = vmatpush1.msra.mxu0 0.0
    %305 = vmatprep.subr.mxu0 0.0
    %306 = vmatpush1.msra.mxu0 0.0
    %307 = vmatprep.subr.mxu0 0.0
    %308 = vmatpush1.msra.mxu0 0.0
    %309 = vmatprep.mubr.f32.mxu0 0.0
    %310 = vmatmul.mubr.f32.gmra.mrb[0].mxu0 %v243
    %v311 = vpop.f32.mrb[0].mxu0
    %v312 = vadd.f32 0.0, %v311
    %v313 = vpop.f32.mrb[0].mxu0
    %314 = vdwg.mxu0
    %v315 = vld [vmem:[#allocation2] sm:$0xff]
    %v316 = vld [vmem:[#allocation2 + $0x8] sm:$0xff]
    %v317 = vld [vmem:[#allocation2 + $0x10] sm:$0xff]
    %v318 = vld [vmem:[#allocation2 + $0x18] sm:$0xff]
    %v319 = vld [vmem:[#allocation2 + $0x20] sm:$0xff]
    %v320 = vld [vmem:[#allocation2 + $0x28] sm:$0xff]
    %v321 = vld [vmem:[#allocation2 + $0x30] sm:$0xff]
    %v322 = vld [vmem:[#allocation2 + $0x38] sm:$0xff]
    %v324 = vcombine.high %v312, %v312
    %v326 = vunpack.c.l.s4 1966171168
    %v327 = vunpack.c.0.s8 %v326
    %v328 = vlaneseq
    %v329 = vshrl.u32 %v328, 7
    %v330 = vsub.s32 %v327, %v329
    %v331 = vrot.slane %v312, %v330
    %v333 = vunpack.c.l.s4 1966171168
    %v334 = vunpack.c.0.s8 %v333
    %v335 = vlaneseq
    %v336 = vshrl.u32 %v335, 7
    %v337 = vsub.s32 %v334, %v336
    %v338 = vrot.slane %v324, %v337
    %v339 = vcombine.high %v331, %v331
    %v340 = vcombine.high %v338, %v338
    %v342 = vunpack.c.l.s4 1966171168
    %v343 = vunpack.c.0.s8 %v342
    %v344 = vlaneseq
    %v345 = vshrl.u32 %v344, 7
    %v346 = vsub.s32 %v343, %v345
    %v347 = vrot.slane %v331, %v346
    %v349 = vunpack.c.l.s4 1966171168
    %v350 = vunpack.c.0.s8 %v349
    %v351 = vlaneseq
    %v352 = vshrl.u32 %v351, 7
    %v353 = vsub.s32 %v350, %v352
    %v354 = vrot.slane %v338, %v353
    %v356 = vunpack.c.l.s4 1966171168
    %v357 = vunpack.c.0.s8 %v356
    %v358 = vlaneseq
    %v359 = vshrl.u32 %v358, 7
    %v360 = vsub.s32 %v357, %v359
    %v361 = vrot.slane %v339, %v360
    %v363 = vunpack.c.l.s4 1966171168
    %v364 = vunpack.c.0.s8 %v363
    %v365 = vlaneseq
    %v366 = vshrl.u32 %v365, 7
    %v367 = vsub.s32 %v364, %v366
    %v368 = vrot.slane %v340, %v367
    %v369 = vcombine.high %v347, %v347
    %v370 = vcombine.high %v354, %v354
    %v371 = vcombine.high %v361, %v361
    %v372 = vcombine.high %v368, %v368
    %v373 = vlaneseq
    %v374 = vshrl.u32 %v373, 7
    %v375 = vsub.s32 0, %v374
    %v376 = vrot.slane %v347, %v375
    %v377 = vlaneseq
    %v378 = vshrl.u32 %v377, 7
    %v379 = vsub.s32 0, %v378
    %v380 = vrot.slane %v361, %v379
    %v381 = vlaneseq
    %v382 = vshrl.u32 %v381, 7
    %v383 = vsub.s32 0, %v382
    %v384 = vrot.slane %v369, %v383
    %v385 = vlaneseq
    %v386 = vshrl.u32 %v385, 7
    %v387 = vsub.s32 0, %v386
    %v388 = vrot.slane %v371, %v387
    %v389 = vlaneseq
    %v390 = vshrl.u32 %v389, 7
    %v391 = vsub.s32 0, %v390
    %v392 = vrot.slane %v354, %v391
    %v393 = vlaneseq
    %v394 = vshrl.u32 %v393, 7
    %v395 = vsub.s32 0, %v394
    %v396 = vrot.slane %v368, %v395
    %v397 = vlaneseq
    %v398 = vshrl.u32 %v397, 7
    %v399 = vsub.s32 0, %v398
    %v400 = vrot.slane %v370, %v399
    %v401 = vlaneseq
    %v402 = vshrl.u32 %v401, 7
    %v403 = vsub.s32 0, %v402
    %v404 = vrot.slane %v372, %v403
    %v413 = vmul.f32 %v376, %v315
    %v414 = vmul.f32 %v380, %v316
    %v415 = vmul.f32 %v384, %v317
    %v416 = vmul.f32 %v388, %v318
    %v417 = vmul.f32 %v392, %v319
    %v418 = vmul.f32 %v396, %v320
    %v419 = vmul.f32 %v400, %v321
    %v420 = vmul.f32 %v404, %v322
    %421 = vadd.xlane.f32.xlu0 %v413
    %v422 = vpop.xlane.xlu0 %421
    %423 = vadd.xlane.f32.xlu0 %v414
    %v424 = vpop.xlane.xlu0 %423
    %425 = vadd.xlane.f32.xlu0 %v415
    %v426 = vpop.xlane.xlu0 %425
    %427 = vadd.xlane.f32.xlu0 %v416
    %v428 = vpop.xlane.xlu0 %427
    %429 = vadd.xlane.f32.xlu0 %v417
    %v430 = vpop.xlane.xlu0 %429
    %431 = vadd.xlane.f32.xlu0 %v418
    %v432 = vpop.xlane.xlu0 %431
    %433 = vadd.xlane.f32.xlu0 %v419
    %v434 = vpop.xlane.xlu0 %433
    %435 = vadd.xlane.f32.xlu0 %v420
    %v436 = vpop.xlane.xlu0 %435
    %v437 = vld [vmem:[#allocation5] sm:$0xff]
    %vm438 = vcmp.eq.f32.partialorder %v437, 0.0
    %v447 = vlaneseq
    %v448 = vand.u32 %v447, 127
    %v449 = vlaneseq
    %v450 = vshrl.u32 %v449, 7
    %v451 = vsub.s32 %v448, %v450
    %v452 = vrot.slane %v422, %v451
    %v453 = vlaneseq
    %v454 = vshrl.u32 %v453, 7
    %v455 = vsub.s32 %v448, %v454
    %v456 = vrot.slane %v424, %v455
    %v457 = vlaneseq
    %v458 = vshrl.u32 %v457, 7
    %v459 = vsub.s32 %v448, %v458
    %v460 = vrot.slane %v426, %v459
    %v461 = vlaneseq
    %v462 = vshrl.u32 %v461, 7
    %v463 = vsub.s32 %v448, %v462
    %v464 = vrot.slane %v428, %v463
    %v465 = vlaneseq
    %v466 = vshrl.u32 %v465, 7
    %v467 = vsub.s32 %v448, %v466
    %v468 = vrot.slane %v430, %v467
    %v469 = vlaneseq
    %v470 = vshrl.u32 %v469, 7
    %v471 = vsub.s32 %v448, %v470
    %v472 = vrot.slane %v432, %v471
    %v473 = vlaneseq
    %v474 = vshrl.u32 %v473, 7
    %v475 = vsub.s32 %v448, %v474
    %v476 = vrot.slane %v434, %v475
    %v477 = vlaneseq
    %v478 = vshrl.u32 %v477, 7
    %v479 = vsub.s32 %v448, %v478
    %v480 = vrot.slane %v436, %v479
    %v481 = vsel %vm230, %v456, %v452
    %v482 = vsel %vm232, %v460, %v481
    %v483 = vsel %vm234, %v464, %v482
    %v484 = vsel %vm236, %v468, %v483
    %v485 = vsel %vm238, %v472, %v484
    %v486 = vsel %vm240, %v476, %v485
    %v487 = vsel %vm242, %v480, %v486
    %v489 = vsel %vm438, -1e+09, %v487
    %v490 = vsel %vm75, %v489, -inf
    %491 = vmax.xlane.f32.xlu0 %v490
    %v492 = vpop.xlane.xlu0 %491
    %v493 = vsub.f32 %v489, %v492
    %v494 = vmul.f32 %v493, 1.442695
    %v495 = vpow.pop %v494
    %v496 = vsel %vm75, %v495, 0.0
    %497 = vadd.xlane.f32.xlu0 %v496
    %v498 = vpop.xlane.xlu0 %497
    %v499 = vlaneseq
    %v500 = vshrl.u32 %v499, 7
    %v501 = vsub.s32 0, %v500
    %v502 = vrot.slane %v495, %v501
    %504 = vbcast.lane.b32.xlu0 %v502, 256
    %v505 = vpop.permute.xlu0 %504
    %v506 = vlaneseq
    %v507 = vshrl.u32 %v506, 7
    %v508 = vsub.s32 1, %v507
    %v509 = vrot.slane %v495, %v508
    %511 = vbcast.lane.b32.xlu0 %v509, 256
    %v512 = vpop.permute.xlu0 %511
    %v513 = vlaneseq
    %v514 = vshrl.u32 %v513, 7
    %v515 = vsub.s32 2, %v514
    %v516 = vrot.slane %v495, %v515
    %518 = vbcast.lane.b32.xlu0 %v516, 256
    %v519 = vpop.permute.xlu0 %518
    %v520 = vlaneseq
    %v521 = vshrl.u32 %v520, 7
    %v522 = vsub.s32 3, %v521
    %v523 = vrot.slane %v495, %v522
    %525 = vbcast.lane.b32.xlu0 %v523, 256
    %v526 = vpop.permute.xlu0 %525
    %v527 = vlaneseq
    %v528 = vshrl.u32 %v527, 7
    %v529 = vsub.s32 4, %v528
    %v530 = vrot.slane %v495, %v529
    %532 = vbcast.lane.b32.xlu0 %v530, 256
    %v533 = vpop.permute.xlu0 %532
    %v534 = vlaneseq
    %v535 = vshrl.u32 %v534, 7
    %v536 = vsub.s32 5, %v535
    %v537 = vrot.slane %v495, %v536
    %539 = vbcast.lane.b32.xlu0 %v537, 256
    %v540 = vpop.permute.xlu0 %539
    %v541 = vlaneseq
    %v542 = vshrl.u32 %v541, 7
    %v543 = vsub.s32 6, %v542
    %v544 = vrot.slane %v495, %v543
    %546 = vbcast.lane.b32.xlu0 %v544, 256
    %v547 = vpop.permute.xlu0 %546
    %v548 = vlaneseq
    %v549 = vshrl.u32 %v548, 7
    %v550 = vsub.s32 7, %v549
    %v551 = vrot.slane %v495, %v550
    %553 = vbcast.lane.b32.xlu0 %v551, 256
    %v554 = vpop.permute.xlu0 %553
    %v555 = vmul.f32 %v505, %v315
    %v556 = vmul.f32 %v512, %v316
    %v557 = vmul.f32 %v519, %v317
    %v558 = vmul.f32 %v526, %v318
    %v559 = vmul.f32 %v533, %v319
    %v560 = vmul.f32 %v540, %v320
    %v561 = vmul.f32 %v547, %v321
    %v562 = vmul.f32 %v554, %v322
    %v563 = vrot.slane %v555, 4
    %v564 = vadd.f32 %v555, %v563
    %v565 = vrot.slane %v564, 2
    %v566 = vadd.f32 %v564, %v565
    %v567 = vrot.slane %v566, 1
    %v568 = vadd.f32 %v566, %v567
    %v569 = vrot.slane %v556, 4
    %v570 = vadd.f32 %v556, %v569
    %v571 = vrot.slane %v570, 2
    %v572 = vadd.f32 %v570, %v571
    %v573 = vrot.slane %v572, 1
    %v574 = vadd.f32 %v572, %v573
    %v575 = vrot.slane %v557, 4
    %v576 = vadd.f32 %v557, %v575
    %v577 = vrot.slane %v576, 2
    %v578 = vadd.f32 %v576, %v577
    %v579 = vrot.slane %v578, 1
    %v580 = vadd.f32 %v578, %v579
    %v581 = vrot.slane %v558, 4
    %v582 = vadd.f32 %v558, %v581
    %v583 = vrot.slane %v582, 2
    %v584 = vadd.f32 %v582, %v583
    %v585 = vrot.slane %v584, 1
    %v586 = vadd.f32 %v584, %v585
    %v587 = vrot.slane %v559, 4
    %v588 = vadd.f32 %v559, %v587
    %v589 = vrot.slane %v588, 2
    %v590 = vadd.f32 %v588, %v589
    %v591 = vrot.slane %v590, 1
    %v592 = vadd.f32 %v590, %v591
    %v593 = vrot.slane %v560, 4
    %v594 = vadd.f32 %v560, %v593
    %v595 = vrot.slane %v594, 2
    %v596 = vadd.f32 %v594, %v595
    %v597 = vrot.slane %v596, 1
    %v598 = vadd.f32 %v596, %v597
    %v599 = vrot.slane %v561, 4
    %v600 = vadd.f32 %v561, %v599
    %v601 = vrot.slane %v600, 2
    %v602 = vadd.f32 %v600, %v601
    %v603 = vrot.slane %v602, 1
    %v604 = vadd.f32 %v602, %v603
    %v605 = vrot.slane %v562, 4
    %v606 = vadd.f32 %v562, %v605
    %v607 = vrot.slane %v606, 2
    %v608 = vadd.f32 %v606, %v607
    %v609 = vrot.slane %v608, 1
    %v610 = vadd.f32 %v608, %v609
    %v611 = vrcp.pop %v498
    %v613 = vrot.slane %v611, 1
    %v614 = vrot.slane %v611, 2
    %v615 = vrot.slane %v611, 3
    %v616 = vrot.slane %v611, 4
    %v617 = vrot.slane %v611, 5
    %v618 = vrot.slane %v611, 6
    %v619 = vrot.slane %v611, 7
    %v628 = vmul.f32 %v568, %v611
    %v629 = vmul.f32 %v574, %v613
    %v630 = vmul.f32 %v580, %v614
    %v631 = vmul.f32 %v586, %v615
    %v632 = vmul.f32 %v592, %v616
    %v633 = vmul.f32 %v598, %v617
    %v634 = vmul.f32 %v604, %v618
    %v635 = vmul.f32 %v610, %v619
    %v644 = vrot.slane %v629, 7
    %v645 = vsel %vm230, %v644, %v628
    %v646 = vrot.slane %v630, 6
    %v647 = vsel %vm232, %v646, %v645
    %v648 = vrot.slane %v631, 5
    %v649 = vsel %vm234, %v648, %v647
    %v650 = vrot.slane %v632, 4
    %v651 = vsel %vm236, %v650, %v649
    %v652 = vrot.slane %v633, 3
    %v653 = vsel %vm238, %v652, %v651
    %v654 = vrot.slane %v634, 2
    %v655 = vsel %vm240, %v654, %v653
    %v656 = vrot.slane %v635, 1
    %v657 = vsel %vm242, %v656, %v655
    %659 = vst [vmem:[#allocation10] sm:$0xff] %v657
    // Predicated region
    $region38: #{tpu_custom_call.1} parent=1 // pred_check
      _
    $region39: #{tpu_custom_call.1} parent=1 // pred_check_branch
      %661 = sbr.rel (0) target = $region41
    $region40: #{tpu_custom_call.1} parent=1 // pred_region
      %s663 = ssub.s32 128, 128
      %664 = vsyncadd [#allocation4], %s663
      %s666 = sshll.u32 [#allocation10], 4
      %s667 = int_to_ptr.vmem [resolvable:$true] %s666
      %669 = dma.vmem_to_hbm [thread:$0]  %s667, 128, %s5, [#allocation4]
    $region41: #{tpu_custom_call.1} parent=1 // pred_fallthru
      _
    // Predicated region
    $region42: #{tpu_custom_call.1} parent=1 // pred_check
      _
    $region43: #{tpu_custom_call.1} parent=1 // pred_check_branch
      %671 = sbr.rel (0) target = $region45
    $region44: #{tpu_custom_call.1} parent=1 // pred_region
      %672 = dma.done [#allocation4], 128
    $region45: #{tpu_custom_call.1} parent=1 // pred_fallthru
      _
    %673 = vsyncpa [#allocation3], 1
    %674 = vsyncpa [#allocation6], 1
    %675 = vsyncpa [#allocation9], 1
    %676 = vsyncpa [#allocation4], 1

</llo_original>
